<compile_context>
chip_gen: v6e
topology: v6e:2x2x1
jax: 0.10.0
libtpu: 0.0.40
codegen_flags: <defaults>
</compile_context>

<pallas_src>
import functools

import jax
import jax.numpy as jnp
from jax.experimental import pallas as pl
from jax.experimental.pallas import tpu as pltpu

FEAT = 28 * 28        # 784 (streamed unpadded; full-dim block on the lane axis)
H1 = 128
H2 = 256
NCLASS = 10
NCLASS_PAD = 128      # lane-dense output width (unmasked vst)
NEG_PAD = -1e30       # exp(NEG_PAD - max) underflows to exactly 0 in f32


def _round_up(n, m):
    return -(-n // m) * m


def _choose_tile_b(batch, use_bf16):
    """Adaptive batch tile.

    Small batches: tile = round_up(B, 8)  -> one step, no wasted rows.
    Large batches: big tiles (fewer 0.35 us grid steps), capped for the v7x
    64 MiB VMEM part (<=2048 f32 / <=4096 bf16), and sized so the grid has at
    least 2 steps (v7x has 2 TensorCores on the parallel batch axis).
    """
    cap = 4096 if use_bf16 else 2048
    b8 = _round_up(max(batch, 1), 8)
    if b8 <= 512:
        return b8
    return min(cap, _round_up(-(-b8 // 2), 8))


def mlp_kernel(x_ref, w1_ref, b1_ref, w2_ref, b2_ref, w3_ref, b3_ref, o_ref):
    # x: (tile_b, 784) tile; weights/biases fully VMEM-resident across tiles
    # (constant index_maps), so only x / out move per grid step.
    x = x_ref[...]

    # layer_1 + ReLU (bf16 operands -> f32 accumulation; ReLU stays f32:
    # v5e's VPU/EUP have no bf16 datapath).
    h1 = jnp.dot(x, w1_ref[...], preferred_element_type=jnp.float32) + b1_ref[...]
    h1 = jnp.maximum(h1, 0.0)

    # layer_2 + ReLU
    h2 = jnp.dot(h1.astype(w2_ref.dtype), w2_ref[...],
                 preferred_element_type=jnp.float32) + b2_ref[...]
    h2 = jnp.maximum(h2, 0.0)

    # layer_3 (classes padded to 128; pad columns carry a huge negative f32 bias)
    logits = jnp.dot(h2.astype(w3_ref.dtype), w3_ref[...],
                     preferred_element_type=jnp.float32) + b3_ref[...]

    # log_softmax over the class axis — exact for the first 10 columns because
    # exp(pad) == 0 and does not perturb the sum.
    m = jnp.max(logits, axis=1, keepdims=True)
    shifted = logits - m
    lse = jnp.log(jnp.sum(jnp.exp(shifted), axis=1, keepdims=True))
    o_ref[...] = shifted - lse


@functools.partial(jax.jit, static_argnames=("use_bf16",))
def mnist_classifier_forward(x_nchw, params, *, use_bf16=True):
    """x_nchw: (B, C, H, W) with C*H*W == 784. Returns (B, 10) f32 log-probs."""
    w1, b1, w2, b2, w3, b3 = params
    B = x_nchw.shape[0]

    mm_dtype = jnp.bfloat16 if use_bf16 else jnp.float32
    tile_b = _choose_tile_b(B, use_bf16)
    b_pad = _round_up(B, tile_b)

    # Single preprocessing pass over x: flatten (free reshape), cast, batch-pad.
    x_in = x_nchw.reshape(B, -1)
    if x_in.dtype != mm_dtype:
        x_in = x_in.astype(mm_dtype)
    if b_pad != B:
        x_in = jnp.pad(x_in, ((0, b_pad - B), (0, 0)))

    # Weights: w1 stays (784, 128); only w3/b3 get the tiny class-dim pad.
    w1c = w1.astype(mm_dtype)
    w2c = w2.astype(mm_dtype)
    w3p = jnp.pad(w3, ((0, 0), (0, NCLASS_PAD - NCLASS))).astype(mm_dtype)
    b3p = jnp.pad(b3, ((0, 0), (0, NCLASS_PAD - NCLASS)),
                  constant_values=NEG_PAD)          # stays f32 (NEG_PAD trick)

    grid = (b_pad // tile_b,)
    const_map = lambda i: (0, 0)  # weights/biases: same block every tile

    itemsize = 2 if use_bf16 else 4
    flops = 2 * b_pad * (FEAT * H1 + H1 * H2 + H2 * NCLASS_PAD)
    bytes_accessed = (
        b_pad * FEAT * itemsize                                   # x
        + (FEAT * H1 + H1 * H2 + H2 * NCLASS_PAD) * itemsize      # weights
        + (H1 + H2 + NCLASS_PAD) * 4                              # biases
        + b_pad * NCLASS_PAD * 4                                  # output
    )

    out = pl.pallas_call(
        mlp_kernel,
        out_shape=jax.ShapeDtypeStruct((b_pad, NCLASS_PAD), jnp.float32),
        grid=grid,
        in_specs=[
            pl.BlockSpec((tile_b, FEAT), lambda i: (i, 0)),    # x tile (full 784 lanes)
            pl.BlockSpec((FEAT, H1), const_map),               # w1 (full array block)
            pl.BlockSpec((1, H1), const_map),                  # b1 (f32)
            pl.BlockSpec((H1, H2), const_map),                 # w2
            pl.BlockSpec((1, H2), const_map),                  # b2 (f32)
            pl.BlockSpec((H2, NCLASS_PAD), const_map),         # w3 (padded cols)
            pl.BlockSpec((1, NCLASS_PAD), const_map),          # b3 (padded, f32)
        ],
        out_specs=pl.BlockSpec((tile_b, NCLASS_PAD), lambda i: (i, 0)),
        compiler_params=pltpu.CompilerParams(
            # Shard batch tiles across v7x's 2 TensorCores (no-op on v5e/v6e).
            dimension_semantics=("parallel",),
            # Enough for tile_b<=2048 f32 / <=4096 bf16 incl. double-buffered
            # x/out blocks and h1/h2/logits temporaries; well under the v7x
            # 64 MiB physical VMEM.
            vmem_limit_bytes=32 * 1024 * 1024,
        ),
        cost_estimate=pl.CostEstimate(
            flops=flops,
            transcendentals=b_pad * (NCLASS_PAD + 1),  # exp per class + log per row
            bytes_accessed=bytes_accessed,
        ),
    )(x_in, w1c, b1, w2c, b2, w3p, b3p)

    return out[:B, :NCLASS]


def init_params(key):
    """PyTorch nn.Linear default init (U(-k, k), k=1/sqrt(fan_in)).
    Weights stored as (in_features, out_features)."""
    dims = [(FEAT, H1), (H1, H2), (H2, NCLASS)]
    params = []
    keys = jax.random.split(key, 2 * len(dims))
    for i, (fan_in, fan_out) in enumerate(dims):
        k = 1.0 / jnp.sqrt(jnp.float32(fan_in))
        w = jax.random.uniform(keys[2 * i], (fan_in, fan_out),
                               minval=-k, maxval=k, dtype=jnp.float32)
        b = jax.random.uniform(keys[2 * i + 1], (1, fan_out),
                               minval=-k, maxval=k, dtype=jnp.float32)
        params.extend([w, b])
    return tuple(params)


def reference_forward(x_nchw, params):
    w1, b1, w2, b2, w3, b3 = params
    x = x_nchw.reshape(x_nchw.shape[0], -1).astype(jnp.float32)
    h = jnp.maximum(x @ w1 + b1, 0.0)
    h = jnp.maximum(h @ w2 + b2, 0.0)
    logits = h @ w3 + b3
    return jax.nn.log_softmax(logits, axis=1)


if __name__ == "__main__":
    key = jax.random.PRNGKey(0)
    k_params, k_x = jax.random.split(key)

    params = init_params(k_params)

    # Small example input consistent with the module: (B=2, C=1, 28, 28).
    x = jax.random.normal(k_x, (2, 1, 28, 28), dtype=jnp.float32)

    ref = reference_forward(x, params)

    # f32 validation path (tight tolerance).
    out_f32 = jax.block_until_ready(
        mnist_classifier_forward(x, params, use_bf16=False))
    assert out_f32.shape == (2, 10), out_f32.shape
    assert jnp.allclose(out_f32, ref, atol=1e-5, rtol=1e-5)

    # Default bf16-operand fast path (f32 accumulation) — looser tolerance.
    out_bf16 = jax.block_until_ready(mnist_classifier_forward(x, params))
    assert out_bf16.shape == (2, 10), out_bf16.shape
    assert jnp.allclose(out_bf16, ref, atol=5e-2, rtol=5e-2)

    print("KERNEL_OK")
</pallas_src>

<mosaic_0001>
module attributes {stable_mosaic.version = 11 : i64} {
  func.func @mlp_kernel(%arg0: i32, %arg1: memref<8x784xf32, #tpu.memory_space<vmem>>, %arg2: memref<784x128xf32, #tpu.memory_space<vmem>>, %arg3: memref<1x128xf32, #tpu.memory_space<vmem>>, %arg4: memref<128x256xf32, #tpu.memory_space<vmem>>, %arg5: memref<1x256xf32, #tpu.memory_space<vmem>>, %arg6: memref<256x128xf32, #tpu.memory_space<vmem>>, %arg7: memref<1x128xf32, #tpu.memory_space<vmem>>, %arg8: memref<8x128xf32, #tpu.memory_space<vmem>>) attributes {dimension_semantics = [#tpu.dimension_semantics<parallel>], iteration_bounds = array<i64: 1>, scalar_prefetch = 0 : i64, scratch_operands = 0 : i64, tpu.core_type = #tpu.core_type<tc>, window_params = [{transform_indices = @transform_0, window_bounds = array<i64: 8, 784>}, {pipeline_mode = #tpu.pipeline_mode<synchronous>, transform_indices = @transform_1, window_bounds = array<i64: 784, 128>}, {pipeline_mode = #tpu.pipeline_mode<synchronous>, transform_indices = @transform_2, window_bounds = array<i64: 1, 128>}, {pipeline_mode = #tpu.pipeline_mode<synchronous>, transform_indices = @transform_3, window_bounds = array<i64: 128, 256>}, {pipeline_mode = #tpu.pipeline_mode<synchronous>, transform_indices = @transform_4, window_bounds = array<i64: 1, 256>}, {pipeline_mode = #tpu.pipeline_mode<synchronous>, transform_indices = @transform_5, window_bounds = array<i64: 256, 128>}, {pipeline_mode = #tpu.pipeline_mode<synchronous>, transform_indices = @transform_6, window_bounds = array<i64: 1, 128>}, {transform_indices = @transform_7, window_bounds = array<i64: 8, 128>}]} {
    %c0 = arith.constant 0 : index
    %c0_0 = arith.constant 0 : index
    %0 = vector.load %arg1[%c0, %c0_0] : memref<8x784xf32, #tpu.memory_space<vmem>>, vector<8x784xf32>
    %c0_1 = arith.constant 0 : index
    %c0_2 = arith.constant 0 : index
    %1 = vector.load %arg2[%c0_1, %c0_2] : memref<784x128xf32, #tpu.memory_space<vmem>>, vector<784x128xf32>
    %cst = arith.constant dense<0.000000e+00> : vector<8x128xf32>
    %2 = tpu.matmul %0, %1, %cst {dimension_numbers = #tpu.dot_dimension_numbers<[1], [0], [0], [1], [0, 0, 1, 1], [], []>} : vector<8x784xf32>, vector<784x128xf32>, vector<8x128xf32> -> vector<8x128xf32>
    %c0_3 = arith.constant 0 : index
    %c0_4 = arith.constant 0 : index
    %3 = vector.load %arg3[%c0_3, %c0_4] : memref<1x128xf32, #tpu.memory_space<vmem>>, vector<1x128xf32>
    %4 = vector.broadcast %3 : vector<1x128xf32> to vector<8x128xf32>
    %5 = arith.addf %2, %4 : vector<8x128xf32>
    %cst_5 = arith.constant 0.000000e+00 : f32
    %6 = vector.broadcast %cst_5 : f32 to vector<8x128xf32>
    %7 = arith.maximumf %5, %6 : vector<8x128xf32>
    %c0_6 = arith.constant 0 : index
    %c0_7 = arith.constant 0 : index
    %8 = vector.load %arg4[%c0_6, %c0_7] : memref<128x256xf32, #tpu.memory_space<vmem>>, vector<128x256xf32>
    %cst_8 = arith.constant dense<0.000000e+00> : vector<8x256xf32>
    %9 = tpu.matmul %7, %8, %cst_8 {dimension_numbers = #tpu.dot_dimension_numbers<[1], [0], [0], [1], [0, 0, 1, 1], [], []>} : vector<8x128xf32>, vector<128x256xf32>, vector<8x256xf32> -> vector<8x256xf32>
    %c0_9 = arith.constant 0 : index
    %c0_10 = arith.constant 0 : index
    %10 = vector.load %arg5[%c0_9, %c0_10] : memref<1x256xf32, #tpu.memory_space<vmem>>, vector<1x256xf32>
    %11 = vector.broadcast %10 : vector<1x256xf32> to vector<8x256xf32>
    %12 = arith.addf %9, %11 : vector<8x256xf32>
    %cst_11 = arith.constant 0.000000e+00 : f32
    %13 = vector.broadcast %cst_11 : f32 to vector<8x256xf32>
    %14 = arith.maximumf %12, %13 : vector<8x256xf32>
    %c0_12 = arith.constant 0 : index
    %c0_13 = arith.constant 0 : index
    %15 = vector.load %arg6[%c0_12, %c0_13] : memref<256x128xf32, #tpu.memory_space<vmem>>, vector<256x128xf32>
    %cst_14 = arith.constant dense<0.000000e+00> : vector<8x128xf32>
    %16 = tpu.matmul %14, %15, %cst_14 {dimension_numbers = #tpu.dot_dimension_numbers<[1], [0], [0], [1], [0, 0, 1, 1], [], []>} : vector<8x256xf32>, vector<256x128xf32>, vector<8x128xf32> -> vector<8x128xf32>
    %c0_15 = arith.constant 0 : index
    %c0_16 = arith.constant 0 : index
    %17 = vector.load %arg7[%c0_15, %c0_16] : memref<1x128xf32, #tpu.memory_space<vmem>>, vector<1x128xf32>
    %18 = vector.broadcast %17 : vector<1x128xf32> to vector<8x128xf32>
    %19 = arith.addf %16, %18 : vector<8x128xf32>
    %cst_17 = arith.constant dense<0xFF800000> : vector<8xf32>
    %20 = vector.multi_reduction <maximumf>, %19, %cst_17 [1] : vector<8x128xf32> to vector<8xf32>
    %21 = vector.shape_cast %20 : vector<8xf32> to vector<8x1xf32>
    %22 = vector.broadcast %21 : vector<8x1xf32> to vector<8x128xf32>
    %23 = arith.subf %19, %22 : vector<8x128xf32>
    %24 = math.exp %23 : vector<8x128xf32>
    %cst_18 = arith.constant dense<0.000000e+00> : vector<8xf32>
    %25 = vector.multi_reduction <add>, %24, %cst_18 [1] : vector<8x128xf32> to vector<8xf32>
    %26 = vector.shape_cast %25 : vector<8xf32> to vector<8x1xf32>
    %27 = math.log %26 : vector<8x1xf32>
    %28 = vector.broadcast %27 : vector<8x1xf32> to vector<8x128xf32>
    %29 = arith.subf %23, %28 : vector<8x128xf32>
    %c0_19 = arith.constant 0 : index
    %c0_20 = arith.constant 0 : index
    %30 = vector.load %arg8[%c0_19, %c0_20] : memref<8x128xf32, #tpu.memory_space<vmem>>, vector<8x128xf32>
    tpu.vector_store %arg8[%c0_19, %c0_20], %29 {strides = array<i32>} : memref<8x128xf32, #tpu.memory_space<vmem>>, vector<8x128xf32>,
    return
  }
  func.func @transform_0(%arg0: i32) -> (i32, i32) {
    %c0_i32 = arith.constant 0 : i32
    %c0_i32_0 = arith.constant 0 : i32
    return %arg0, %c0_i32 : i32, i32
  }
  func.func @transform_1(%arg0: i32) -> (i32, i32) {
    %c0_i32 = arith.constant 0 : i32
    %c0_i32_0 = arith.constant 0 : i32
    %c0_i32_1 = arith.constant 0 : i32
    return %c0_i32, %c0_i32_0 : i32, i32
  }
  func.func @transform_2(%arg0: i32) -> (i32, i32) {
    %c0_i32 = arith.constant 0 : i32
    %c0_i32_0 = arith.constant 0 : i32
    %c0_i32_1 = arith.constant 0 : i32
    return %c0_i32, %c0_i32_0 : i32, i32
  }
  func.func @transform_3(%arg0: i32) -> (i32, i32) {
    %c0_i32 = arith.constant 0 : i32
    %c0_i32_0 = arith.constant 0 : i32
    %c0_i32_1 = arith.constant 0 : i32
    return %c0_i32, %c0_i32_0 : i32, i32
  }
  func.func @transform_4(%arg0: i32) -> (i32, i32) {
    %c0_i32 = arith.constant 0 : i32
    %c0_i32_0 = arith.constant 0 : i32
    %c0_i32_1 = arith.constant 0 : i32
    return %c0_i32, %c0_i32_0 : i32, i32
  }
  func.func @transform_5(%arg0: i32) -> (i32, i32) {
    %c0_i32 = arith.constant 0 : i32
    %c0_i32_0 = arith.constant 0 : i32
    %c0_i32_1 = arith.constant 0 : i32
    return %c0_i32, %c0_i32_0 : i32, i32
  }
  func.func @transform_6(%arg0: i32) -> (i32, i32) {
    %c0_i32 = arith.constant 0 : i32
    %c0_i32_0 = arith.constant 0 : i32
    %c0_i32_1 = arith.constant 0 : i32
    return %c0_i32, %c0_i32_0 : i32, i32
  }
  func.func @transform_7(%arg0: i32) -> (i32, i32) {
    %c0_i32 = arith.constant 0 : i32
    %c0_i32_0 = arith.constant 0 : i32
    return %arg0, %c0_i32 : i32, i32
  }
}

</mosaic_0001>

<llo_original>
// kernel: mnist_classifier_forward.1
$region0: #{mnist_classifier_forward.1}
  #allocation0 [shape = 'u32[]', space=smem, size = 0x4, offset = 0x4, fixed_abs, tag = 'smem constant byte address 0x4 - core index']
  #allocation1 [shape = 'u32[144,128]{1,0:T(1,128)}', space=vmem, size = 0x12000, scoped, tag = 'internal scratch']
  %s0 = inlined_call_operand.vmem [shape: f32[8,784], index: 0, kind: input, shape index: {}]
  %s1 = inlined_call_operand.vmem [shape: f32[784,128], index: 1, kind: input, shape index: {}]
  %s2 = inlined_call_operand.vmem [shape: f32[1,128], index: 2, kind: input, shape index: {}]
  %s3 = inlined_call_operand.vmem [shape: f32[128,256], index: 3, kind: input, shape index: {}]
  %s4 = inlined_call_operand.vmem [shape: f32[1,256], index: 4, kind: input, shape index: {}]
  %s5 = inlined_call_operand.vmem [shape: f32[256,128], index: 5, kind: input, shape index: {}]
  %s6 = inlined_call_operand.vmem [shape: f32[1,128], index: 6, kind: input, shape index: {}]
  %s7 = inlined_call_operand.vmem [shape: f32[8,128], index: 7, kind: output, shape index: {}]
  %s8 = sld [smem:[#allocation0]]
  $region38: #{mnist_classifier_forward.1} parent=0
    _
  %s10 = ssub.s32 1, %s8
  %s11 = scalar_select 0, %s10, %s8
  // Predicated region
  $region2: #{mnist_classifier_forward.1} parent=0 // pred_check
    _
  $region3: #{mnist_classifier_forward.1} parent=0 // pred_check_branch
    %13 = sbr.rel (0) target = $region5
  $region4: #{mnist_classifier_forward.1} parent=0 // pred_region
    _
  $region5: #{mnist_classifier_forward.1} parent=0 // pred_fallthru
    _
  // Predicated region
  $region6: #{mnist_classifier_forward.1} parent=0 // pred_check
    _
  $region7: #{mnist_classifier_forward.1} parent=0 // pred_check_branch
    %15 = sbr.rel (0) target = $region9
  $region8: #{mnist_classifier_forward.1} parent=0 // pred_region
    _
  $region9: #{mnist_classifier_forward.1} parent=0 // pred_fallthru
    _
  // Predicated region
  $region10: #{mnist_classifier_forward.1} parent=0 // pred_check
    _
  $region11: #{mnist_classifier_forward.1} parent=0 // pred_check_branch
    %17 = sbr.rel (0) target = $region13
  $region12: #{mnist_classifier_forward.1} parent=0 // pred_region
    _
  $region13: #{mnist_classifier_forward.1} parent=0 // pred_fallthru
    _
  // Predicated region
  $region14: #{mnist_classifier_forward.1} parent=0 // pred_check
    _
  $region15: #{mnist_classifier_forward.1} parent=0 // pred_check_branch
    %19 = sbr.rel (0) target = $region17
  $region16: #{mnist_classifier_forward.1} parent=0 // pred_region
    _
  $region17: #{mnist_classifier_forward.1} parent=0 // pred_fallthru
    _
  // Predicated region
  $region18: #{mnist_classifier_forward.1} parent=0 // pred_check
    _
  $region19: #{mnist_classifier_forward.1} parent=0 // pred_check_branch
    %21 = sbr.rel (0) target = $region21
  $region20: #{mnist_classifier_forward.1} parent=0 // pred_region
    _
  $region21: #{mnist_classifier_forward.1} parent=0 // pred_fallthru
    _
  // Predicated region
  $region22: #{mnist_classifier_forward.1} parent=0 // pred_check
    _
  $region23: #{mnist_classifier_forward.1} parent=0 // pred_check_branch
    %23 = sbr.rel (0) target = $region25
  $region24: #{mnist_classifier_forward.1} parent=0 // pred_region
    _
  $region25: #{mnist_classifier_forward.1} parent=0 // pred_fallthru
    _
  // Predicated region
  $region26: #{mnist_classifier_forward.1} parent=0 // pred_check
    _
  $region27: #{mnist_classifier_forward.1} parent=0 // pred_check_branch
    %25 = sbr.rel (0) target = $region29
  $region28: #{mnist_classifier_forward.1} parent=0 // pred_region
    _
  $region29: #{mnist_classifier_forward.1} parent=0 // pred_fallthru
    _
  %v26 = vld [vmem:[%s0] sm:$0xff]
  %v27 = vld [vmem:[%s0 + $0x8] sm:$0xff]
  %v28 = vld [vmem:[%s0 + $0x10] sm:$0xff]
  %v29 = vld [vmem:[%s0 + $0x18] sm:$0xff]
  %v30 = vld [vmem:[%s0 + $0x20] sm:$0xff]
  %v31 = vld [vmem:[%s0 + $0x28] sm:$0xff]
  %v32 = vld [vmem:[%s0 + $0x30] sm:$0xff]
  %v33 = vld [vmem:[%s1] sm:$0xff]
  %v34 = vld [vmem:[%s1 + $0x8] sm:$0xff]
  %v35 = vld [vmem:[%s1 + $0x10] sm:$0xff]
  %v36 = vld [vmem:[%s1 + $0x18] sm:$0xff]
  %v37 = vld [vmem:[%s1 + $0x20] sm:$0xff]
  %v38 = vld [vmem:[%s1 + $0x28] sm:$0xff]
  %v39 = vld [vmem:[%s1 + $0x30] sm:$0xff]
  %v40 = vld [vmem:[%s1 + $0x38] sm:$0xff]
  %v41 = vld [vmem:[%s1 + $0x40] sm:$0xff]
  %v42 = vld [vmem:[%s1 + $0x48] sm:$0xff]
  %v43 = vld [vmem:[%s1 + $0x50] sm:$0xff]
  %v44 = vld [vmem:[%s1 + $0x58] sm:$0xff]
  %v45 = vld [vmem:[%s1 + $0x60] sm:$0xff]
  %v46 = vld [vmem:[%s1 + $0x68] sm:$0xff]
  %v47 = vld [vmem:[%s1 + $0x70] sm:$0xff]
  %v48 = vld [vmem:[%s1 + $0x78] sm:$0xff]
  %v49 = vld [vmem:[%s1 + $0x80] sm:$0xff]
  %v50 = vld [vmem:[%s1 + $0x88] sm:$0xff]
  %v51 = vld [vmem:[%s1 + $0x90] sm:$0xff]
  %v52 = vld [vmem:[%s1 + $0x98] sm:$0xff]
  %v53 = vld [vmem:[%s1 + $0xa0] sm:$0xff]
  %v54 = vld [vmem:[%s1 + $0xa8] sm:$0xff]
  %v55 = vld [vmem:[%s1 + $0xb0] sm:$0xff]
  %v56 = vld [vmem:[%s1 + $0xb8] sm:$0xff]
  %v57 = vld [vmem:[%s1 + $0xc0] sm:$0xff]
  %v58 = vld [vmem:[%s1 + $0xc8] sm:$0xff]
  %v59 = vld [vmem:[%s1 + $0xd0] sm:$0xff]
  %v60 = vld [vmem:[%s1 + $0xd8] sm:$0xff]
  %v61 = vld [vmem:[%s1 + $0xe0] sm:$0xff]
  %v62 = vld [vmem:[%s1 + $0xe8] sm:$0xff]
  %v63 = vld [vmem:[%s1 + $0xf0] sm:$0xff]
  %v64 = vld [vmem:[%s1 + $0xf8] sm:$0xff]
  %v65 = vld [vmem:[%s1 + $0x100] sm:$0xff]
  %v66 = vld [vmem:[%s1 + $0x108] sm:$0xff]
  %v67 = vld [vmem:[%s1 + $0x110] sm:$0xff]
  %v68 = vld [vmem:[%s1 + $0x118] sm:$0xff]
  %v69 = vld [vmem:[%s1 + $0x120] sm:$0xff]
  %v70 = vld [vmem:[%s1 + $0x128] sm:$0xff]
  %v71 = vld [vmem:[%s1 + $0x130] sm:$0xff]
  %v72 = vld [vmem:[%s1 + $0x138] sm:$0xff]
  %v73 = vld [vmem:[%s1 + $0x140] sm:$0xff]
  %v74 = vld [vmem:[%s1 + $0x148] sm:$0xff]
  %v75 = vld [vmem:[%s1 + $0x150] sm:$0xff]
  %v76 = vld [vmem:[%s1 + $0x158] sm:$0xff]
  %v77 = vld [vmem:[%s1 + $0x160] sm:$0xff]
  %v78 = vld [vmem:[%s1 + $0x168] sm:$0xff]
  %v79 = vld [vmem:[%s1 + $0x170] sm:$0xff]
  %v80 = vld [vmem:[%s1 + $0x178] sm:$0xff]
  %v81 = vld [vmem:[%s1 + $0x180] sm:$0xff]
  %v82 = vld [vmem:[%s1 + $0x188] sm:$0xff]
  %v83 = vld [vmem:[%s1 + $0x190] sm:$0xff]
  %v84 = vld [vmem:[%s1 + $0x198] sm:$0xff]
  %v85 = vld [vmem:[%s1 + $0x1a0] sm:$0xff]
  %v86 = vld [vmem:[%s1 + $0x1a8] sm:$0xff]
  %v87 = vld [vmem:[%s1 + $0x1b0] sm:$0xff]
  %v88 = vld [vmem:[%s1 + $0x1b8] sm:$0xff]
  %v89 = vld [vmem:[%s1 + $0x1c0] sm:$0xff]
  %v90 = vld [vmem:[%s1 + $0x1c8] sm:$0xff]
  %v91 = vld [vmem:[%s1 + $0x1d0] sm:$0xff]
  %v92 = vld [vmem:[%s1 + $0x1d8] sm:$0xff]
  %v93 = vld [vmem:[%s1 + $0x1e0] sm:$0xff]
  %v94 = vld [vmem:[%s1 + $0x1e8] sm:$0xff]
  %v95 = vld [vmem:[%s1 + $0x1f0] sm:$0xff]
  %v96 = vld [vmem:[%s1 + $0x1f8] sm:$0xff]
  %v97 = vld [vmem:[%s1 + $0x200] sm:$0xff]
  %v98 = vld [vmem:[%s1 + $0x208] sm:$0xff]
  %v99 = vld [vmem:[%s1 + $0x210] sm:$0xff]
  %v100 = vld [vmem:[%s1 + $0x218] sm:$0xff]
  %v101 = vld [vmem:[%s1 + $0x220] sm:$0xff]
  %v102 = vld [vmem:[%s1 + $0x228] sm:$0xff]
  %v103 = vld [vmem:[%s1 + $0x230] sm:$0xff]
  %v104 = vld [vmem:[%s1 + $0x238] sm:$0xff]
  %v105 = vld [vmem:[%s1 + $0x240] sm:$0xff]
  %v106 = vld [vmem:[%s1 + $0x248] sm:$0xff]
  %v107 = vld [vmem:[%s1 + $0x250] sm:$0xff]
  %v108 = vld [vmem:[%s1 + $0x258] sm:$0xff]
  %v109 = vld [vmem:[%s1 + $0x260] sm:$0xff]
  %v110 = vld [vmem:[%s1 + $0x268] sm:$0xff]
  %v111 = vld [vmem:[%s1 + $0x270] sm:$0xff]
  %v112 = vld [vmem:[%s1 + $0x278] sm:$0xff]
  %v113 = vld [vmem:[%s1 + $0x280] sm:$0xff]
  %v114 = vld [vmem:[%s1 + $0x288] sm:$0xff]
  %v115 = vld [vmem:[%s1 + $0x290] sm:$0xff]
  %v116 = vld [vmem:[%s1 + $0x298] sm:$0xff]
  %v117 = vld [vmem:[%s1 + $0x2a0] sm:$0xff]
  %v118 = vld [vmem:[%s1 + $0x2a8] sm:$0xff]
  %v119 = vld [vmem:[%s1 + $0x2b0] sm:$0xff]
  %v120 = vld [vmem:[%s1 + $0x2b8] sm:$0xff]
  %v121 = vld [vmem:[%s1 + $0x2c0] sm:$0xff]
  %v122 = vld [vmem:[%s1 + $0x2c8] sm:$0xff]
  %v123 = vld [vmem:[%s1 + $0x2d0] sm:$0xff]
  %v124 = vld [vmem:[%s1 + $0x2d8] sm:$0xff]
  %v125 = vld [vmem:[%s1 + $0x2e0] sm:$0xff]
  %v126 = vld [vmem:[%s1 + $0x2e8] sm:$0xff]
  %v127 = vld [vmem:[%s1 + $0x2f0] sm:$0xff]
  %v128 = vld [vmem:[%s1 + $0x2f8] sm:$0xff]
  %v129 = vld [vmem:[%s1 + $0x300] sm:$0xff]
  %v130 = vld [vmem:[%s1 + $0x308] sm:$0xff]
  %v131 = vld [vmem:[%s2] sm:$0x1]
  %v133 = vlaneseq
  %v134 = vshrl.u32 %v133, 7
  %v135 = vsub.s32 0, %v134
  %v136 = vrot.slane %v131, %v135
  %vm138 = vcmask 130048
  %v140 = vsel %vm138, %v32, 0
  %142 = vmatprep.subr.mxu0 0.0
  %143 = vmatpush1.msra.mxu0 %v48
  %144 = vmatprep.subr.mxu0 0.0
  %145 = vmatpush1.msra.mxu0 %v47
  %146 = vmatprep.subr.mxu0 0.0
  %147 = vmatpush1.msra.mxu0 %v46
  %148 = vmatprep.subr.mxu0 0.0
  %149 = vmatpush1.msra.mxu0 %v45
  %150 = vmatprep.subr.mxu0 0.0
  %151 = vmatpush1.msra.mxu0 %v44
  %152 = vmatprep.subr.mxu0 0.0
  %153 = vmatpush1.msra.mxu0 %v43
  %154 = vmatprep.subr.mxu0 0.0
  %155 = vmatpush1.msra.mxu0 %v42
  %156 = vmatprep.subr.mxu0 0.0
  %157 = vmatpush1.msra.mxu0 %v41
  %158 = vmatprep.subr.mxu0 0.0
  %159 = vmatpush1.msra.mxu0 %v40
  %160 = vmatprep.subr.mxu0 0.0
  %161 = vmatpush1.msra.mxu0 %v39
  %162 = vmatprep.subr.mxu0 0.0
  %163 = vmatpush1.msra.mxu0 %v38
  %164 = vmatprep.subr.mxu0 0.0
  %165 = vmatpush1.msra.mxu0 %v37
  %166 = vmatprep.subr.mxu0 0.0
  %167 = vmatpush1.msra.mxu0 %v36
  %168 = vmatprep.subr.mxu0 0.0
  %169 = vmatpush1.msra.mxu0 %v35
  %170 = vmatprep.subr.mxu0 0.0
  %171 = vmatpush1.msra.mxu0 %v34
  %172 = vmatprep.subr.mxu0 0.0
  %173 = vmatpush1.msra.mxu0 %v33
  %174 = vmatprep.subr.mxu0 0.0
  %175 = vmatpush2.msra.mxu0 %v64
  %176 = vmatprep.subr.mxu0 0.0
  %177 = vmatpush2.msra.mxu0 %v63
  %178 = vmatprep.subr.mxu0 0.0
  %179 = vmatpush2.msra.mxu0 %v62
  %180 = vmatprep.subr.mxu0 0.0
  %181 = vmatpush2.msra.mxu0 %v61
  %182 = vmatprep.subr.mxu0 0.0
  %183 = vmatpush2.msra.mxu0 %v60
  %184 = vmatprep.subr.mxu0 0.0
  %185 = vmatpush2.msra.mxu0 %v59
  %186 = vmatprep.subr.mxu0 0.0
  %187 = vmatpush2.msra.mxu0 %v58
  %188 = vmatprep.subr.mxu0 0.0
  %189 = vmatpush2.msra.mxu0 %v57
  %190 = vmatprep.subr.mxu0 0.0
  %191 = vmatpush2.msra.mxu0 %v56
  %192 = vmatprep.subr.mxu0 0.0
  %193 = vmatpush2.msra.mxu0 %v55
  %194 = vmatprep.subr.mxu0 0.0
  %195 = vmatpush2.msra.mxu0 %v54
  %196 = vmatprep.subr.mxu0 0.0
  %197 = vmatpush2.msra.mxu0 %v53
  %198 = vmatprep.subr.mxu0 0.0
  %199 = vmatpush2.msra.mxu0 %v52
  %200 = vmatprep.subr.mxu0 0.0
  %201 = vmatpush2.msra.mxu0 %v51
  %202 = vmatprep.subr.mxu0 0.0
  %203 = vmatpush2.msra.mxu0 %v50
  %204 = vmatprep.subr.mxu0 0.0
  %205 = vmatpush2.msra.mxu0 %v49
  %206 = vmatprep.mubr.f32.mxu0 %v27
  %207 = vmatmul.mubr.f32.gmra.mxu0 %v26
  %v208 = vpop.f32.mrf.mxu0
  %v209 = vadd.f32 %v136, %v208
  %v210 = vpop.f32.mrf.mxu0
  %211 = vdwg.mxu0
  %212 = vmatprep.subr.mxu0 0.0
  %213 = vmatpush1.msra.mxu0 %v80
  %214 = vmatprep.subr.mxu0 0.0
  %215 = vmatpush1.msra.mxu0 %v79
  %216 = vmatprep.subr.mxu0 0.0
  %217 = vmatpush1.msra.mxu0 %v78
  %218 = vmatprep.subr.mxu0 0.0
  %219 = vmatpush1.msra.mxu0 %v77
  %220 = vmatprep.subr.mxu0 0.0
  %221 = vmatpush1.msra.mxu0 %v76
  %222 = vmatprep.subr.mxu0 0.0
  %223 = vmatpush1.msra.mxu0 %v75
  %224 = vmatprep.subr.mxu0 0.0
  %225 = vmatpush1.msra.mxu0 %v74
  %226 = vmatprep.subr.mxu0 0.0
  %227 = vmatpush1.msra.mxu0 %v73
  %228 = vmatprep.subr.mxu0 0.0
  %229 = vmatpush1.msra.mxu0 %v72
  %230 = vmatprep.subr.mxu0 0.0
  %231 = vmatpush1.msra.mxu0 %v71
  %232 = vmatprep.subr.mxu0 0.0
  %233 = vmatpush1.msra.mxu0 %v70
  %234 = vmatprep.subr.mxu0 0.0
  %235 = vmatpush1.msra.mxu0 %v69
  %236 = vmatprep.subr.mxu0 0.0
  %237 = vmatpush1.msra.mxu0 %v68
  %238 = vmatprep.subr.mxu0 0.0
  %239 = vmatpush1.msra.mxu0 %v67
  %240 = vmatprep.subr.mxu0 0.0
  %241 = vmatpush1.msra.mxu0 %v66
  %242 = vmatprep.subr.mxu0 0.0
  %243 = vmatpush1.msra.mxu0 %v65
  %244 = vmatprep.subr.mxu0 0.0
  %245 = vmatpush2.msra.mxu0 %v96
  %246 = vmatprep.subr.mxu0 0.0
  %247 = vmatpush2.msra.mxu0 %v95
  %248 = vmatprep.subr.mxu0 0.0
  %249 = vmatpush2.msra.mxu0 %v94
  %250 = vmatprep.subr.mxu0 0.0
  %251 = vmatpush2.msra.mxu0 %v93
  %252 = vmatprep.subr.mxu0 0.0
  %253 = vmatpush2.msra.mxu0 %v92
  %254 = vmatprep.subr.mxu0 0.0
  %255 = vmatpush2.msra.mxu0 %v91
  %256 = vmatprep.subr.mxu0 0.0
  %257 = vmatpush2.msra.mxu0 %v90
  %258 = vmatprep.subr.mxu0 0.0
  %259 = vmatpush2.msra.mxu0 %v89
  %260 = vmatprep.subr.mxu0 0.0
  %261 = vmatpush2.msra.mxu0 %v88
  %262 = vmatprep.subr.mxu0 0.0
  %263 = vmatpush2.msra.mxu0 %v87
  %264 = vmatprep.subr.mxu0 0.0
  %265 = vmatpush2.msra.mxu0 %v86
  %266 = vmatprep.subr.mxu0 0.0
  %267 = vmatpush2.msra.mxu0 %v85
  %268 = vmatprep.subr.mxu0 0.0
  %269 = vmatpush2.msra.mxu0 %v84
  %270 = vmatprep.subr.mxu0 0.0
  %271 = vmatpush2.msra.mxu0 %v83
  %272 = vmatprep.subr.mxu0 0.0
  %273 = vmatpush2.msra.mxu0 %v82
  %274 = vmatprep.subr.mxu0 0.0
  %275 = vmatpush2.msra.mxu0 %v81
  %276 = vmatprep.mubr.f32.mxu0 %v29
  %277 = vmatmul.mubr.f32.gmra.mxu0 %v28
  %v278 = vpop.f32.mrf.mxu0
  %v279 = vadd.f32 %v209, %v278
  %v280 = vpop.f32.mrf.mxu0
  %281 = vdwg.mxu0
  %282 = vmatprep.subr.mxu0 0.0
  %283 = vmatpush1.msra.mxu0 %v112
  %284 = vmatprep.subr.mxu0 0.0
  %285 = vmatpush1.msra.mxu0 %v111
  %286 = vmatprep.subr.mxu0 0.0
  %287 = vmatpush1.msra.mxu0 %v110
  %288 = vmatprep.subr.mxu0 0.0
  %289 = vmatpush1.msra.mxu0 %v109
  %290 = vmatprep.subr.mxu0 0.0
  %291 = vmatpush1.msra.mxu0 %v108
  %292 = vmatprep.subr.mxu0 0.0
  %293 = vmatpush1.msra.mxu0 %v107
  %294 = vmatprep.subr.mxu0 0.0
  %295 = vmatpush1.msra.mxu0 %v106
  %296 = vmatprep.subr.mxu0 0.0
  %297 = vmatpush1.msra.mxu0 %v105
  %298 = vmatprep.subr.mxu0 0.0
  %299 = vmatpush1.msra.mxu0 %v104
  %300 = vmatprep.subr.mxu0 0.0
  %301 = vmatpush1.msra.mxu0 %v103
  %302 = vmatprep.subr.mxu0 0.0
  %303 = vmatpush1.msra.mxu0 %v102
  %304 = vmatprep.subr.mxu0 0.0
  %305 = vmatpush1.msra.mxu0 %v101
  %306 = vmatprep.subr.mxu0 0.0
  %307 = vmatpush1.msra.mxu0 %v100
  %308 = vmatprep.subr.mxu0 0.0
  %309 = vmatpush1.msra.mxu0 %v99
  %310 = vmatprep.subr.mxu0 0.0
  %311 = vmatpush1.msra.mxu0 %v98
  %312 = vmatprep.subr.mxu0 0.0
  %313 = vmatpush1.msra.mxu0 %v97
  %314 = vmatprep.subr.mxu0 0.0
  %315 = vmatpush2.msra.mxu0 %v128
  %316 = vmatprep.subr.mxu0 0.0
  %317 = vmatpush2.msra.mxu0 %v127
  %318 = vmatprep.subr.mxu0 0.0
  %319 = vmatpush2.msra.mxu0 %v126
  %320 = vmatprep.subr.mxu0 0.0
  %321 = vmatpush2.msra.mxu0 %v125
  %322 = vmatprep.subr.mxu0 0.0
  %323 = vmatpush2.msra.mxu0 %v124
  %324 = vmatprep.subr.mxu0 0.0
  %325 = vmatpush2.msra.mxu0 %v123
  %326 = vmatprep.subr.mxu0 0.0
  %327 = vmatpush2.msra.mxu0 %v122
  %328 = vmatprep.subr.mxu0 0.0
  %329 = vmatpush2.msra.mxu0 %v121
  %330 = vmatprep.subr.mxu0 0.0
  %331 = vmatpush2.msra.mxu0 %v120
  %332 = vmatprep.subr.mxu0 0.0
  %333 = vmatpush2.msra.mxu0 %v119
  %334 = vmatprep.subr.mxu0 0.0
  %335 = vmatpush2.msra.mxu0 %v118
  %336 = vmatprep.subr.mxu0 0.0
  %337 = vmatpush2.msra.mxu0 %v117
  %338 = vmatprep.subr.mxu0 0.0
  %339 = vmatpush2.msra.mxu0 %v116
  %340 = vmatprep.subr.mxu0 0.0
  %341 = vmatpush2.msra.mxu0 %v115
  %342 = vmatprep.subr.mxu0 0.0
  %343 = vmatpush2.msra.mxu0 %v114
  %344 = vmatprep.subr.mxu0 0.0
  %345 = vmatpush2.msra.mxu0 %v113
  %346 = vmatprep.mubr.f32.mxu0 %v31
  %347 = vmatmul.mubr.f32.gmra.mxu0 %v30
  %v348 = vpop.f32.mrf.mxu0
  %v349 = vadd.f32 %v279, %v348
  %v350 = vpop.f32.mrf.mxu0
  %351 = vdwg.mxu0
  %352 = vmatprep.subr.mxu0 0.0
  %353 = vmatpush1.msra.mxu0 0.0
  %354 = vmatprep.subr.mxu0 0.0
  %355 = vmatpush1.msra.mxu0 0.0
  %356 = vmatprep.subr.mxu0 0.0
  %357 = vmatpush1.msra.mxu0 0.0
  %358 = vmatprep.subr.mxu0 0.0
  %359 = vmatpush1.msra.mxu0 0.0
  %360 = vmatprep.subr.mxu0 0.0
  %361 = vmatpush1.msra.mxu0 0.0
  %362 = vmatprep.subr.mxu0 0.0
  %363 = vmatpush1.msra.mxu0 0.0
  %364 = vmatprep.subr.mxu0 0.0
  %365 = vmatpush1.msra.mxu0 0.0
  %366 = vmatprep.subr.mxu0 0.0
  %367 = vmatpush1.msra.mxu0 0.0
  %368 = vmatprep.subr.mxu0 0.0
  %369 = vmatpush1.msra.mxu0 0.0
  %370 = vmatprep.subr.mxu0 0.0
  %371 = vmatpush1.msra.mxu0 0.0
  %372 = vmatprep.subr.mxu0 0.0
  %373 = vmatpush1.msra.mxu0 0.0
  %374 = vmatprep.subr.mxu0 0.0
  %375 = vmatpush1.msra.mxu0 0.0
  %376 = vmatprep.subr.mxu0 0.0
  %377 = vmatpush1.msra.mxu0 0.0
  %378 = vmatprep.subr.mxu0 0.0
  %379 = vmatpush1.msra.mxu0 0.0
  %380 = vmatprep.subr.mxu0 0.0
  %381 = vmatpush1.msra.mxu0 %v130
  %382 = vmatprep.subr.mxu0 0.0
  %383 = vmatpush1.msra.mxu0 %v129
  %384 = vmatprep.subr.mxu0 0.0
  %385 = vmatpush2.msra.mxu0 0.0
  %386 = vmatprep.subr.mxu0 0.0
  %387 = vmatpush2.msra.mxu0 0.0
  %388 = vmatprep.subr.mxu0 0.0
  %389 = vmatpush2.msra.mxu0 0.0
  %390 = vmatprep.subr.mxu0 0.0
  %391 = vmatpush2.msra.mxu0 0.0
  %392 = vmatprep.subr.mxu0 0.0
  %393 = vmatpush2.msra.mxu0 0.0
  %394 = vmatprep.subr.mxu0 0.0
  %395 = vmatpush2.msra.mxu0 0.0
  %396 = vmatprep.subr.mxu0 0.0
  %397 = vmatpush2.msra.mxu0 0.0
  %398 = vmatprep.subr.mxu0 0.0
  %399 = vmatpush2.msra.mxu0 0.0
  %400 = vmatprep.subr.mxu0 0.0
  %401 = vmatpush2.msra.mxu0 0.0
  %402 = vmatprep.subr.mxu0 0.0
  %403 = vmatpush2.msra.mxu0 0.0
  %404 = vmatprep.subr.mxu0 0.0
  %405 = vmatpush2.msra.mxu0 0.0
  %406 = vmatprep.subr.mxu0 0.0
  %407 = vmatpush2.msra.mxu0 0.0
  %408 = vmatprep.subr.mxu0 0.0
  %409 = vmatpush2.msra.mxu0 0.0
  %410 = vmatprep.subr.mxu0 0.0
  %411 = vmatpush2.msra.mxu0 0.0
  %412 = vmatprep.subr.mxu0 0.0
  %413 = vmatpush2.msra.mxu0 0.0
  %414 = vmatprep.subr.mxu0 0.0
  %415 = vmatpush2.msra.mxu0 0.0
  %416 = vmatprep.mubr.f32.mxu0 0.0
  %417 = vmatmul.mubr.f32.gmra.mxu0 %v140
  %v418 = vpop.f32.mrf.mxu0
  %v419 = vadd.f32 %v349, %v418
  %v420 = vpop.f32.mrf.mxu0
  %421 = vdwg.mxu0
  %v422 = vmax.f32 %v419, 0.0
  %v423 = vld [vmem:[%s3] sm:$0xff]
  %v424 = vld [vmem:[%s3 + $0x8] sm:$0xff]
  %v425 = vld [vmem:[%s3 + $0x10] sm:$0xff]
  %v426 = vld [vmem:[%s3 + $0x18] sm:$0xff]
  %v427 = vld [vmem:[%s3 + $0x20] sm:$0xff]
  %v428 = vld [vmem:[%s3 + $0x28] sm:$0xff]
  %v429 = vld [vmem:[%s3 + $0x30] sm:$0xff]
  %v430 = vld [vmem:[%s3 + $0x38] sm:$0xff]
  %v431 = vld [vmem:[%s3 + $0x40] sm:$0xff]
  %v432 = vld [vmem:[%s3 + $0x48] sm:$0xff]
  %v433 = vld [vmem:[%s3 + $0x50] sm:$0xff]
  %v434 = vld [vmem:[%s3 + $0x58] sm:$0xff]
  %v435 = vld [vmem:[%s3 + $0x60] sm:$0xff]
  %v436 = vld [vmem:[%s3 + $0x68] sm:$0xff]
  %v437 = vld [vmem:[%s3 + $0x70] sm:$0xff]
  %v438 = vld [vmem:[%s3 + $0x78] sm:$0xff]
  %v439 = vld [vmem:[%s3 + $0x80] sm:$0xff]
  %v440 = vld [vmem:[%s3 + $0x88] sm:$0xff]
  %v441 = vld [vmem:[%s3 + $0x90] sm:$0xff]
  %v442 = vld [vmem:[%s3 + $0x98] sm:$0xff]
  %v443 = vld [vmem:[%s3 + $0xa0] sm:$0xff]
  %v444 = vld [vmem:[%s3 + $0xa8] sm:$0xff]
  %v445 = vld [vmem:[%s3 + $0xb0] sm:$0xff]
  %v446 = vld [vmem:[%s3 + $0xb8] sm:$0xff]
  %v447 = vld [vmem:[%s3 + $0xc0] sm:$0xff]
  %v448 = vld [vmem:[%s3 + $0xc8] sm:$0xff]
  %v449 = vld [vmem:[%s3 + $0xd0] sm:$0xff]
  %v450 = vld [vmem:[%s3 + $0xd8] sm:$0xff]
  %v451 = vld [vmem:[%s3 + $0xe0] sm:$0xff]
  %v452 = vld [vmem:[%s3 + $0xe8] sm:$0xff]
  %v453 = vld [vmem:[%s3 + $0xf0] sm:$0xff]
  %v454 = vld [vmem:[%s3 + $0xf8] sm:$0xff]
  %v455 = vld [vmem:[%s4] sm:$0x3]
  %v457 = vlaneseq
  %v458 = vshrl.u32 %v457, 7
  %v459 = vsub.s32 0, %v458
  %v460 = vrot.slane %v455, %v459
  %v461 = vlaneseq
  %v462 = vshrl.u32 %v461, 7
  %v463 = vsub.s32 1, %v462
  %v464 = vrot.slane %v455, %v463
  %467 = vmatprep.subr.mxu0 %v454
  %468 = vmatpush1.msra.mxu0 %v453
  %469 = vmatprep.subr.mxu0 %v452
  %470 = vmatpush1.msra.mxu0 %v451
  %471 = vmatprep.subr.mxu0 %v450
  %472 = vmatpush1.msra.mxu0 %v449
  %473 = vmatprep.subr.mxu0 %v448
  %474 = vmatpush1.msra.mxu0 %v447
  %475 = vmatprep.subr.mxu0 %v446
  %476 = vmatpush1.msra.mxu0 %v445
  %477 = vmatprep.subr.mxu0 %v444
  %478 = vmatpush1.msra.mxu0 %v443
  %479 = vmatprep.subr.mxu0 %v442
  %480 = vmatpush1.msra.mxu0 %v441
  %481 = vmatprep.subr.mxu0 %v440
  %482 = vmatpush1.msra.mxu0 %v439
  %483 = vmatprep.subr.mxu0 %v438
  %484 = vmatpush1.msra.mxu0 %v437
  %485 = vmatprep.subr.mxu0 %v436
  %486 = vmatpush1.msra.mxu0 %v435
  %487 = vmatprep.subr.mxu0 %v434
  %488 = vmatpush1.msra.mxu0 %v433
  %489 = vmatprep.subr.mxu0 %v432
  %490 = vmatpush1.msra.mxu0 %v431
  %491 = vmatprep.subr.mxu0 %v430
  %492 = vmatpush1.msra.mxu0 %v429
  %493 = vmatprep.subr.mxu0 %v428
  %494 = vmatpush1.msra.mxu0 %v427
  %495 = vmatprep.subr.mxu0 %v426
  %496 = vmatpush1.msra.mxu0 %v425
  %497 = vmatprep.subr.mxu0 %v424
  %498 = vmatpush1.msra.mxu0 %v423
  %499 = vmatprep.subr.mxu0 0.0
  %500 = vmatpush2.msra.mxu0 0.0
  %501 = vmatprep.subr.mxu0 0.0
  %502 = vmatpush2.msra.mxu0 0.0
  %503 = vmatprep.subr.mxu0 0.0
  %504 = vmatpush2.msra.mxu0 0.0
  %505 = vmatprep.subr.mxu0 0.0
  %506 = vmatpush2.msra.mxu0 0.0
  %507 = vmatprep.subr.mxu0 0.0
  %508 = vmatpush2.msra.mxu0 0.0
  %509 = vmatprep.subr.mxu0 0.0
  %510 = vmatpush2.msra.mxu0 0.0
  %511 = vmatprep.subr.mxu0 0.0
  %512 = vmatpush2.msra.mxu0 0.0
  %513 = vmatprep.subr.mxu0 0.0
  %514 = vmatpush2.msra.mxu0 0.0
  %515 = vmatprep.subr.mxu0 0.0
  %516 = vmatpush2.msra.mxu0 0.0
  %517 = vmatprep.subr.mxu0 0.0
  %518 = vmatpush2.msra.mxu0 0.0
  %519 = vmatprep.subr.mxu0 0.0
  %520 = vmatpush2.msra.mxu0 0.0
  %521 = vmatprep.subr.mxu0 0.0
  %522 = vmatpush2.msra.mxu0 0.0
  %523 = vmatprep.subr.mxu0 0.0
  %524 = vmatpush2.msra.mxu0 0.0
  %525 = vmatprep.subr.mxu0 0.0
  %526 = vmatpush2.msra.mxu0 0.0
  %527 = vmatprep.subr.mxu0 0.0
  %528 = vmatpush2.msra.mxu0 0.0
  %529 = vmatprep.subr.mxu0 0.0
  %530 = vmatpush2.msra.mxu0 0.0
  %531 = vmatprep.mubr.f32.mxu0 0.0
  %532 = vmatmul.mubr.f32.gmra.mxu0 %v422
  %v533 = vpop.f32.mrf.mxu0
  %v534 = vadd.f32 %v460, %v533
  %v535 = vpop.f32.mrf.mxu0
  %v536 = vadd.f32 %v464, %v535
  %537 = vdwg.mxu0
  %v538 = vmax.f32 %v534, 0.0
  %v539 = vmax.f32 %v536, 0.0
  %v540 = vld [vmem:[%s5] sm:$0xff]
  %v541 = vld [vmem:[%s5 + $0x8] sm:$0xff]
  %v542 = vld [vmem:[%s5 + $0x10] sm:$0xff]
  %v543 = vld [vmem:[%s5 + $0x18] sm:$0xff]
  %v544 = vld [vmem:[%s5 + $0x20] sm:$0xff]
  %v545 = vld [vmem:[%s5 + $0x28] sm:$0xff]
  %v546 = vld [vmem:[%s5 + $0x30] sm:$0xff]
  %v547 = vld [vmem:[%s5 + $0x38] sm:$0xff]
  %v548 = vld [vmem:[%s5 + $0x40] sm:$0xff]
  %v549 = vld [vmem:[%s5 + $0x48] sm:$0xff]
  %v550 = vld [vmem:[%s5 + $0x50] sm:$0xff]
  %v551 = vld [vmem:[%s5 + $0x58] sm:$0xff]
  %v552 = vld [vmem:[%s5 + $0x60] sm:$0xff]
  %v553 = vld [vmem:[%s5 + $0x68] sm:$0xff]
  %v554 = vld [vmem:[%s5 + $0x70] sm:$0xff]
  %v555 = vld [vmem:[%s5 + $0x78] sm:$0xff]
  %v556 = vld [vmem:[%s5 + $0x80] sm:$0xff]
  %v557 = vld [vmem:[%s5 + $0x88] sm:$0xff]
  %v558 = vld [vmem:[%s5 + $0x90] sm:$0xff]
  %v559 = vld [vmem:[%s5 + $0x98] sm:$0xff]
  %v560 = vld [vmem:[%s5 + $0xa0] sm:$0xff]
  %v561 = vld [vmem:[%s5 + $0xa8] sm:$0xff]
  %v562 = vld [vmem:[%s5 + $0xb0] sm:$0xff]
  %v563 = vld [vmem:[%s5 + $0xb8] sm:$0xff]
  %v564 = vld [vmem:[%s5 + $0xc0] sm:$0xff]
  %v565 = vld [vmem:[%s5 + $0xc8] sm:$0xff]
  %v566 = vld [vmem:[%s5 + $0xd0] sm:$0xff]
  %v567 = vld [vmem:[%s5 + $0xd8] sm:$0xff]
  %v568 = vld [vmem:[%s5 + $0xe0] sm:$0xff]
  %v569 = vld [vmem:[%s5 + $0xe8] sm:$0xff]
  %v570 = vld [vmem:[%s5 + $0xf0] sm:$0xff]
  %v571 = vld [vmem:[%s5 + $0xf8] sm:$0xff]
  %v572 = vld [vmem:[%s6] sm:$0x1]
  %v574 = vlaneseq
  %v575 = vshrl.u32 %v574, 7
  %v576 = vsub.s32 0, %v575
  %v577 = vrot.slane %v572, %v576
  %579 = vmatprep.subr.mxu0 0.0
  %580 = vmatpush1.msra.mxu0 %v555
  %581 = vmatprep.subr.mxu0 0.0
  %582 = vmatpush1.msra.mxu0 %v554
  %583 = vmatprep.subr.mxu0 0.0
  %584 = vmatpush1.msra.mxu0 %v553
  %585 = vmatprep.subr.mxu0 0.0
  %586 = vmatpush1.msra.mxu0 %v552
  %587 = vmatprep.subr.mxu0 0.0
  %588 = vmatpush1.msra.mxu0 %v551
  %589 = vmatprep.subr.mxu0 0.0
  %590 = vmatpush1.msra.mxu0 %v550
  %591 = vmatprep.subr.mxu0 0.0
  %592 = vmatpush1.msra.mxu0 %v549
  %593 = vmatprep.subr.mxu0 0.0
  %594 = vmatpush1.msra.mxu0 %v548
  %595 = vmatprep.subr.mxu0 0.0
  %596 = vmatpush1.msra.mxu0 %v547
  %597 = vmatprep.subr.mxu0 0.0
  %598 = vmatpush1.msra.mxu0 %v546
  %599 = vmatprep.subr.mxu0 0.0
  %600 = vmatpush1.msra.mxu0 %v545
  %601 = vmatprep.subr.mxu0 0.0
  %602 = vmatpush1.msra.mxu0 %v544
  %603 = vmatprep.subr.mxu0 0.0
  %604 = vmatpush1.msra.mxu0 %v543
  %605 = vmatprep.subr.mxu0 0.0
  %606 = vmatpush1.msra.mxu0 %v542
  %607 = vmatprep.subr.mxu0 0.0
  %608 = vmatpush1.msra.mxu0 %v541
  %609 = vmatprep.subr.mxu0 0.0
  %610 = vmatpush1.msra.mxu0 %v540
  %611 = vmatprep.subr.mxu0 0.0
  %612 = vmatpush2.msra.mxu0 %v571
  %613 = vmatprep.subr.mxu0 0.0
  %614 = vmatpush2.msra.mxu0 %v570
  %615 = vmatprep.subr.mxu0 0.0
  %616 = vmatpush2.msra.mxu0 %v569
  %617 = vmatprep.subr.mxu0 0.0
  %618 = vmatpush2.msra.mxu0 %v568
  %619 = vmatprep.subr.mxu0 0.0
  %620 = vmatpush2.msra.mxu0 %v567
  %621 = vmatprep.subr.mxu0 0.0
  %622 = vmatpush2.msra.mxu0 %v566
  %623 = vmatprep.subr.mxu0 0.0
  %624 = vmatpush2.msra.mxu0 %v565
  %625 = vmatprep.subr.mxu0 0.0
  %626 = vmatpush2.msra.mxu0 %v564
  %627 = vmatprep.subr.mxu0 0.0
  %628 = vmatpush2.msra.mxu0 %v563
  %629 = vmatprep.subr.mxu0 0.0
  %630 = vmatpush2.msra.mxu0 %v562
  %631 = vmatprep.subr.mxu0 0.0
  %632 = vmatpush2.msra.mxu0 %v561
  %633 = vmatprep.subr.mxu0 0.0
  %634 = vmatpush2.msra.mxu0 %v560
  %635 = vmatprep.subr.mxu0 0.0
  %636 = vmatpush2.msra.mxu0 %v559
  %637 = vmatprep.subr.mxu0 0.0
  %638 = vmatpush2.msra.mxu0 %v558
  %639 = vmatprep.subr.mxu0 0.0
  %640 = vmatpush2.msra.mxu0 %v557
  %641 = vmatprep.subr.mxu0 0.0
  %642 = vmatpush2.msra.mxu0 %v556
  %643 = vmatprep.mubr.f32.mxu0 %v539
  %644 = vmatmul.mubr.f32.gmra.mxu0 %v538
  %v645 = vpop.f32.mrf.mxu0
  %v646 = vadd.f32 %v577, %v645
  %v647 = vpop.f32.mrf.mxu0
  %648 = vdwg.mxu0
  %649 = vmax.xlane.f32.xlu0 %v646
  %v650 = vpop.xlane.xlu0 %649
  %v651 = vsub.f32 %v646, %v650
  %v652 = vmul.f32 %v651, 1.442695
  %v653 = vpow.pop %v652
  %654 = vadd.xlane.f32.xlu0 %v653
  %v655 = vpop.xlane.xlu0 %654
  %v656 = vlog2.pop %v655
  %v657 = vmul.f32 %v656, 0.6931472
  %v658 = vsub.f32 %v651, %v657
  %659 = vst [vmem:[%s7] sm:$0xff] %v658
  // Predicated region
  $region30: #{mnist_classifier_forward.1} parent=0 // pred_check
    _
  $region31: #{mnist_classifier_forward.1} parent=0 // pred_check_branch
    %661 = sbr.rel (0) target = $region33
  $region32: #{mnist_classifier_forward.1} parent=0 // pred_region
    _
  $region33: #{mnist_classifier_forward.1} parent=0 // pred_fallthru
    _
  // Predicated region
  $region34: #{mnist_classifier_forward.1} parent=0 // pred_check
    _
  $region35: #{mnist_classifier_forward.1} parent=0 // pred_check_branch
    %663 = sbr.rel (0) target = $region37
  $region36: #{mnist_classifier_forward.1} parent=0 // pred_region
    _
  $region37: #{mnist_classifier_forward.1} parent=0 // pred_fallthru
    _

</llo_original>
